<compile_context>
chip_gen: v6e
topology: v6e:2x2x1
jax: 0.10.0
libtpu: 0.0.40
codegen_flags: <defaults>
</compile_context>

<pallas_src>
import math

import jax
import jax.numpy as jnp
from jax.experimental import pallas as pl
from jax.experimental.pallas import tpu as pltpu


# ----------------------------------------------------------------------------
# Parameter setup (mirrors Grid2DPositionalEncoding.__init__ exactly)
# ----------------------------------------------------------------------------
def make_grid2d_pe(d_model: int, max_height: int = 30, max_width: int = 30,
                   dtype=jnp.float32) -> jnp.ndarray:
    """Builds the pe buffer of shape (1, max_height*max_width, d_model)."""
    assert d_model % 4 == 0, "Grid2DPositionalEncoding requires d_model % 4 == 0"

    pos_h = jnp.arange(0, max_height, dtype=jnp.float32)[:, None]   # (H, 1)
    pos_w = jnp.arange(0, max_width, dtype=jnp.float32)[:, None]    # (W, 1)

    # Faithful transcription of the PyTorch buffer construction.
    # NOTE: pos_w.repeat(H,1).t().reshape(-1,1) is value-wise identical to the
    # tile used for pos_grid_h (both cycle 0..N-1); this mirrors the original
    # module exactly (flagged upstream as a possible intent bug).
    pos_grid_h = jnp.tile(pos_h, (max_width, 1))                     # (H*W, 1)
    pos_grid_w = jnp.tile(pos_w, (max_height, 1)).T.reshape(-1, 1)   # (W*H, 1)

    div_term = jnp.exp(
        jnp.arange(0, d_model, 2, dtype=jnp.float32) * (-math.log(10000.0) / d_model)
    )

    pe = jnp.zeros((max_height * max_width, d_model), dtype=jnp.float32)
    pe = pe.at[:, 0:d_model:4].set(jnp.sin(pos_grid_h * div_term[0::2]))
    pe = pe.at[:, 1:d_model:4].set(jnp.cos(pos_grid_h * div_term[0::2]))
    pe = pe.at[:, 2:d_model:4].set(jnp.sin(pos_grid_w * div_term[1::2]))
    pe = pe.at[:, 3:d_model:4].set(jnp.cos(pos_grid_w * div_term[1::2]))
    return pe[None].astype(dtype)   # (1, H*W, d_model)


# ----------------------------------------------------------------------------
# Pallas kernel: lane-dense broadcast add
# ----------------------------------------------------------------------------
def _add_pe_kernel(x_ref, pe_ref, o_ref):
    # x_ref : (bt, lt) or (bt, 8, lt)  activation tile
    # pe_ref: (1,  lt) or (1,  8, lt)  pe tile (resident across the inner batch
    #                                  loop), broadcast over the batch dim.
    # Cast x up to the (possibly promoted) output dtype on the VPU.
    o_ref[...] = x_ref[...].astype(o_ref.dtype) + pe_ref[...]


# ----------------------------------------------------------------------------
# Tiling helpers
# ----------------------------------------------------------------------------
def _divisors(n: int) -> set:
    ds = set()
    i = 1
    while i * i <= n:
        if n % i == 0:
            ds.add(i)
            ds.add(n // i)
        i += 1
    return ds


def _round_up(n: int, m: int) -> int:
    return ((n + m - 1) // m) * m


def _device_kind() -> str:
    try:
        return jax.devices()[0].device_kind.lower()
    except Exception:
        return ""


def _default_target_block_bytes() -> int:
    # v7x: ~3.2 TB/s HBM makes the ~0.35 us per-step overhead a larger fraction
    # of block time, so use bigger blocks there.  v5e/v6e: ~1 MiB already sits
    # at ~85% of roofline; bigger only adds VMEM pressure.
    return (2 << 20) if "v7" in _device_kind() else (1 << 20)


def _min_grid_blocks() -> int:
    # v7x has 2 TensorCores per chip: make sure both get work and each core's
    # pipeline has >= 2 steps when the problem is splittable.
    return 4 if "v7" in _device_kind() else 2


def _choose_tiling(b, flat, x_itemsize, out_itemsize, target_block_bytes,
                   vmem_budget_bytes, min_blocks):
    """Pick the block layout for the lane-dense broadcast-add.

    Returns (folded, bt, lt, per_buffer_vmem_bytes).
      folded: if True, arrays are reshaped to (b, 8, flat//8) so both x and pe
              blocks are exactly 8 sublanes tall (no sublane-padding waste).
      bt:     batch tile (blocks along axis 0 of x / out).
      lt:     lane tile along the flattened last axis.
    """
    folded = (flat % (8 * 128) == 0)
    lane_extent = flat // 8 if folded else flat

    # Lane-tile candidates: every multiple of 128 that divides lane_extent
    # (full divisor search, not just halving); fallback is the full extent.
    if lane_extent % 128 == 0:
        lane_cands = sorted((d * 128 for d in _divisors(lane_extent // 128)),
                            reverse=True)
    else:
        lane_cands = [lane_extent]

    # Batch-tile candidates.
    if folded:
        bt_cands = sorted(_divisors(b), reverse=True)          # leading dim: any divisor
    else:
        # 2-D layout: second-to-last dim must be a multiple of 8 or the full extent.
        bt_cands = sorted({d for d in _divisors(b) if d % 8 == 0} | {b}, reverse=True)

    def x_rows(bt):                       # sublane rows a VMEM x/out block occupies
        return bt * 8 if folded else _round_up(bt, 8)

    def per_buffer_bytes(bt, lt):         # one pipeline buffer: x + out + pe blocks
        return lt * (x_rows(bt) * (x_itemsize + out_itemsize) + 8 * out_itemsize)

    def x_block_bytes(bt, lt):            # actual x-block HBM bytes (pipelining grain)
        return (bt * 8 if folded else bt) * lt * x_itemsize

    lt_min = lane_cands[-1]

    # Largest batch tile for which the smallest lane tile still fits both budgets.
    bt = bt_cands[-1]
    for cand in bt_cands:
        if (x_block_bytes(cand, lt_min) <= target_block_bytes
                and 2 * per_buffer_bytes(cand, lt_min) <= vmem_budget_bytes):
            bt = cand
            break

    # Largest lane tile that fits both budgets.
    lt = lt_min
    for cand in lane_cands:
        if (x_block_bytes(bt, cand) <= target_block_bytes
                and 2 * per_buffer_bytes(bt, cand) <= vmem_budget_bytes):
            lt = cand
            break

    # Non-degenerate grid: split the lane axis when the grid would otherwise be
    # too small (keeps v7x's second core busy, gives the pipeline >= 2 steps).
    def grid_size(lt_):
        return (lane_extent // lt_) * (b // bt)

    if grid_size(lt) < min_blocks:
        for cand in lane_cands:           # descending -> stop at the largest OK tile
            if cand <= lt:
                lt = cand
                if grid_size(cand) >= min_blocks:
                    break

    return folded, bt, lt, per_buffer_bytes(bt, lt)


# ----------------------------------------------------------------------------
# Wrapper: equivalent of Grid2DPositionalEncoding.forward
# ----------------------------------------------------------------------------
def grid2d_positional_encoding(x: jnp.ndarray, pe_flat: jnp.ndarray, *,
                               donate_x: bool = False,
                               target_block_bytes: int | None = None,
                               vmem_budget_bytes: int = 24 << 20) -> jnp.ndarray:
    """x: (batch, seq_len, d_model); pe_flat: (1, seq_len*d_model) already in the
    promoted output dtype. Returns x + pe (dtype = pe_flat.dtype)."""
    b, seq_len, d_model = x.shape
    flat = seq_len * d_model
    assert pe_flat.shape == (1, flat), (pe_flat.shape, (1, flat))

    out_dtype = pe_flat.dtype
    x_it = jnp.dtype(x.dtype).itemsize
    out_it = jnp.dtype(out_dtype).itemsize

    if target_block_bytes is None:
        target_block_bytes = _default_target_block_bytes()
    min_blocks = _min_grid_blocks()

    folded, bt, lt, per_buf = _choose_tiling(
        b, flat, x_it, out_it, target_block_bytes, vmem_budget_bytes, min_blocks)

    if folded:
        # (b, 8, flat//8): both x and pe blocks are exactly 8 sublanes tall.
        lane_extent = flat // 8
        x2 = x.reshape(b, 8, lane_extent)
        pe2 = pe_flat.reshape(1, 8, lane_extent)
        x_spec = pl.BlockSpec((bt, 8, lt), lambda j, i: (i, 0, j))
        pe_spec = pl.BlockSpec((1, 8, lt), lambda j, i: (0, 0, j))
        out_shape = jax.ShapeDtypeStruct((b, 8, lane_extent), out_dtype)
    else:
        lane_extent = flat
        x2 = x.reshape(b, flat)
        pe2 = pe_flat
        x_spec = pl.BlockSpec((bt, lt), lambda j, i: (i, j))
        pe_spec = pl.BlockSpec((1, lt), lambda j, i: (0, j))
        out_shape = jax.ShapeDtypeStruct((b, flat), out_dtype)

    n_lane = lane_extent // lt
    n_batch = b // bt

    # Advisory cost: one add/elem; bytes = read(x) + read(pe) + write(out).
    cost = pl.CostEstimate(
        flops=b * flat,
        transcendentals=0,
        bytes_accessed=b * flat * x_it + flat * out_it + b * flat * out_it,
    )

    # Alias x -> out when the caller donates x (only legal if dtypes match).
    aliases = {0: 0} if (donate_x and x.dtype == out_dtype) else {}

    out2 = pl.pallas_call(
        _add_pe_kernel,
        out_shape=out_shape,
        grid_spec=pl.GridSpec(
            # Lane axis OUTER, batch axis INNER: pe's block index is constant
            # across consecutive (inner) steps so its tile stays resident.
            grid=(n_lane, n_batch),
            in_specs=[x_spec, pe_spec],
            out_specs=x_spec,
        ),
        compiler_params=pltpu.CompilerParams(
            dimension_semantics=("parallel", "parallel"),
            # Budgeted above so 2 * per_buf <= vmem_budget_bytes; 32 MiB limit
            # is safe under every generation's physical VMEM (incl. v7x 64 MiB).
            vmem_limit_bytes=max(32 << 20, 2 * per_buf + (4 << 20)),
        ),
        cost_estimate=cost,
        input_output_aliases=aliases,
    )(x2, pe2)

    return out2.reshape(b, seq_len, d_model)


# ----------------------------------------------------------------------------
# Module-like wrapper: caches the pe slice/cast/flatten out of the hot path
# ----------------------------------------------------------------------------
class Grid2DPositionalEncoding:
    def __init__(self, d_model: int, max_height: int = 30, max_width: int = 30):
        self.d_model = d_model
        self.max_seq = max_height * max_width
        self.pe = make_grid2d_pe(d_model, max_height, max_width)   # (1, H*W, D) f32
        self._pe_flat_cache = {}

    def _pe_flat(self, seq_len: int, out_dtype) -> jnp.ndarray:
        key = (int(seq_len), jnp.dtype(out_dtype).name)
        hit = self._pe_flat_cache.get(key)
        if hit is None:
            hit = self.pe[0, :seq_len, :].astype(out_dtype).reshape(
                1, seq_len * self.d_model)
            hit = jax.block_until_ready(hit)    # pay the prep cost once, not per call
            self._pe_flat_cache[key] = hit
        return hit

    def __call__(self, x: jnp.ndarray, donate_x: bool = False) -> jnp.ndarray:
        # Mirror PyTorch type promotion: bf16/fp16 x + f32 pe -> f32 output.
        out_dtype = jnp.result_type(x.dtype, self.pe.dtype)
        pe_flat = self._pe_flat(x.shape[1], out_dtype)
        return grid2d_positional_encoding(x, pe_flat, donate_x=donate_x)


# ----------------------------------------------------------------------------
# Pure-JAX reference (direct transcription of the forward pass)
# ----------------------------------------------------------------------------
def _reference(x, pe):
    seq_len = x.shape[1]
    return x + pe[:, :seq_len]


if __name__ == "__main__":
    d_model = 32
    batch = 2
    height, width = 8, 8           # seq_len = 64 <= max_height * max_width
    seq_len = height * width

    module = Grid2DPositionalEncoding(d_model, max_height=30, max_width=30)

    key = jax.random.PRNGKey(0)
    x = jax.random.normal(key, (batch, seq_len, d_model), dtype=jnp.float32)

    out = module(x)
    out = jax.block_until_ready(out)

    ref = _reference(x, module.pe)
    assert out.shape == (batch, seq_len, d_model)
    assert out.dtype == ref.dtype
    assert jnp.allclose(out, ref, atol=1e-6, rtol=1e-6)

    print("KERNEL_OK")
</pallas_src>

<mosaic_0001>
module attributes {stable_mosaic.version = 11 : i64} {
  func.func @_add_pe_kernel(%arg0: i32, %arg1: i32, %arg2: memref<2x8x128xf32, #tpu.memory_space<vmem>>, %arg3: memref<1x8x128xf32, #tpu.memory_space<vmem>>, %arg4: memref<2x8x128xf32, #tpu.memory_space<vmem>>) attributes {dimension_semantics = [#tpu.dimension_semantics<parallel>, #tpu.dimension_semantics<parallel>], iteration_bounds = array<i64: 2, 1>, scalar_prefetch = 0 : i64, scratch_operands = 0 : i64, tpu.core_type = #tpu.core_type<tc>, window_params = [{transform_indices = @transform_0, window_bounds = array<i64: 2, 8, 128>}, {transform_indices = @transform_1, window_bounds = array<i64: 1, 8, 128>}, {transform_indices = @transform_2, window_bounds = array<i64: 2, 8, 128>}]} {
    %c0 = arith.constant 0 : index
    %c0_0 = arith.constant 0 : index
    %c0_1 = arith.constant 0 : index
    %0 = vector.load %arg2[%c0, %c0_0, %c0_1] : memref<2x8x128xf32, #tpu.memory_space<vmem>>, vector<2x8x128xf32>
    %c0_2 = arith.constant 0 : index
    %c0_3 = arith.constant 0 : index
    %c0_4 = arith.constant 0 : index
    %1 = vector.load %arg3[%c0_2, %c0_3, %c0_4] : memref<1x8x128xf32, #tpu.memory_space<vmem>>, vector<1x8x128xf32>
    %2 = vector.broadcast %1 : vector<1x8x128xf32> to vector<2x8x128xf32>
    %3 = arith.addf %0, %2 : vector<2x8x128xf32>
    %c0_5 = arith.constant 0 : index
    %c0_6 = arith.constant 0 : index
    %c0_7 = arith.constant 0 : index
    %4 = vector.load %arg4[%c0_5, %c0_6, %c0_7] : memref<2x8x128xf32, #tpu.memory_space<vmem>>, vector<2x8x128xf32>
    tpu.vector_store %arg4[%c0_5, %c0_6, %c0_7], %3 {strides = array<i32>} : memref<2x8x128xf32, #tpu.memory_space<vmem>>, vector<2x8x128xf32>,
    return
  }
  func.func @transform_0(%arg0: i32, %arg1: i32) -> (i32, i32, i32) {
    %c0_i32 = arith.constant 0 : i32
    %c0_i32_0 = arith.constant 0 : i32
    return %arg1, %c0_i32, %arg0 : i32, i32, i32
  }
  func.func @transform_1(%arg0: i32, %arg1: i32) -> (i32, i32, i32) {
    %c0_i32 = arith.constant 0 : i32
    %c0_i32_0 = arith.constant 0 : i32
    %c0_i32_1 = arith.constant 0 : i32
    return %c0_i32, %c0_i32_0, %arg0 : i32, i32, i32
  }
  func.func @transform_2(%arg0: i32, %arg1: i32) -> (i32, i32, i32) {
    %c0_i32 = arith.constant 0 : i32
    %c0_i32_0 = arith.constant 0 : i32
    return %arg1, %c0_i32, %arg0 : i32, i32, i32
  }
}

</mosaic_0001>

<llo_original>
// kernel: tpu_custom_call.1
$region0: #{tpu_custom_call.1}
  #allocation0 [shape = 'u32[]', space=smem, size = 0x4, offset = 0x4, fixed_abs, tag = 'smem constant byte address 0x4 - core index']
  #allocation1 [shape = 'u32[144,128]{1,0:T(1,128)}', space=vmem, size = 0x12000, scoped, tag = 'internal scratch']
  %s0 = inlined_call_operand.hbm [shape: f32[2,8,256], index: 0, kind: input, shape index: {}]
  %s1 = inlined_call_operand.hbm [shape: f32[1,8,256], index: 1, kind: input, shape index: {}]
  %s2 = inlined_call_operand.hbm [shape: f32[2,8,256], index: 2, kind: output, shape index: {}]
  %s3 = sld [smem:[#allocation0]]
  $region49: #{tpu_custom_call.1} parent=0
    _
  %s5 = ssub.s32 1, %s3
  %s6 = scalar_select 0, %s5, %s3
  $region1: #{tpu_custom_call.1} parent=0
    #allocation2 [shape = 'u8[16384]{0}', space=vmem, size = 0x4000, scoped, tag = 'input window, operand 0']
    #allocation3 [shape = 's32[2]{0}', space=sflag, size = 0x8, scoped, tag = 'scoped memory for tpu_custom_call.1']
    #allocation4 [shape = 's32[2]{0}', space=sflag, size = 0x8, scoped, tag = 'scoped memory for tpu_custom_call.1']
    #allocation5 [shape = 'u8[8192]{0}', space=vmem, size = 0x2000, scoped, tag = 'input window, operand 1']
    #allocation6 [shape = 's32[2]{0}', space=sflag, size = 0x8, scoped, tag = 'scoped memory for tpu_custom_call.1']
    #allocation7 [shape = 'u8[16384]{0}', space=vmem, size = 0x4000, scoped, tag = 'output window, operand 0']
    %7 = vsyncpa [#allocation3], 0
    %s8 = scalar_lea.sflag [#allocation3], 1
    %9 = vsyncpa %s8, 0
    %10 = vsyncpa [#allocation6], 0
    %s11 = scalar_lea.sflag [#allocation6], 1
    %12 = vsyncpa %s11, 0
    %13 = vsyncpa [#allocation4], 0
    %s14 = scalar_lea.sflag [#allocation4], 1
    %15 = vsyncpa %s14, 0
    loop: start=0, step=1, limit=4
    $region2: #{tpu_custom_call.1} parent=1 // loop_pre_header
      _
    $region3: #{tpu_custom_call.1} parent=1 // loop_header
      %s17 = sphi 0, %s21
      %p18 = scmp.ge.s32.totalorder %s17, 4
      %s24 = sphi 0, %s36
      %s25 = sphi 0, %s32
      %s26 = sphi 0, %s24
      %s27 = sphi 0, %s25
      %s28 = sphi 0, %s26
      %s29 = sphi 0, %s27
      %s41 = sphi 0, %s43
      %s44 = sphi 0, %s41
      %s45 = sphi 0, %s44
      %s61 = sphi 0, %s45
      %s67 = sphi 0, %s69
      %s70 = sphi 0, %s67
      %s71 = sphi 0, %s70
      %s87 = sphi 0, %s71
      %s95 = sphi 0, %s97
      %s98 = sphi 0, %s95
      %s99 = sphi 0, %s98
      %s115 = sphi 0, %s99
    $region4: #{tpu_custom_call.1} parent=1 // loop_header_branch
      %20 = sbr.rel (%p18) target = $region8
    $region5: #{tpu_custom_call.1} parent=1 // loop_body
      %s22 = ssub.s32 %s17, 1
      %s23 = ssub.s32 %s17, 2
      %s30 = sadd.s32 1, %s25
      %p31 = scmp.ge.s32.totalorder %s30, 1
      %s32 = scalar_select %p31, 0, %s30
      %s33 = sadd.s32 1, %s24
      %s34 = scalar_select %p31, %s33, %s24
      %p35 = scmp.ge.s32.totalorder %s34, 2
      %s36 = scalar_select %p35, 0, %s34
      %s37 = ssub.s32 %s25, %s32
      %s38 = ssub.s32 %s24, %s36
      %s39 = sor.u32 %s37, %s38
      %p40 = scmp.eq.s32.totalorder %s39, 0
      %s42 = sadd.s32 %s41, 1
      %s43 = scalar_select %p40, %s41, %s42
      %p46 = pneg %p40
      %p47 = scmp.eq.s32.totalorder %s17, 1
      %p48 = por %p46, %p47
      %p49 = scmp.ne.s32.totalorder %s41, %s44
      %p50 = scmp.eq.s32.totalorder %s17, 0
      %p51 = por %p49, %p50
      %p52 = scmp.ne.s32.totalorder %s41, %s44
      %p53 = scmp.eq.s32.totalorder %s22, 1
      %p54 = por %p52, %p53
      %p55 = scmp.ne.s32.totalorder %s44, %s45
      %p56 = scmp.eq.s32.totalorder %s22, 0
      %p57 = por %p55, %p56
      %p58 = scmp.ne.s32.totalorder %s44, %s45
      %p59 = scmp.eq.s32.totalorder %s23, 1
      %p60 = por %p58, %p59
      %p62 = scmp.ne.s32.totalorder %s45, %s61
      %p63 = scmp.eq.s32.totalorder %s23, 0
      %p64 = por %p62, %p63
      %s65 = ssub.s32 %s24, %s36
      %p66 = scmp.eq.s32.totalorder %s65, 0
      %s68 = sadd.s32 %s67, 1
      %s69 = scalar_select %p66, %s67, %s68
      %p72 = pneg %p66
      %p73 = scmp.eq.s32.totalorder %s17, 1
      %p74 = por %p72, %p73
      %p75 = scmp.ne.s32.totalorder %s67, %s70
      %p76 = scmp.eq.s32.totalorder %s17, 0
      %p77 = por %p75, %p76
      %p78 = scmp.ne.s32.totalorder %s67, %s70
      %p79 = scmp.eq.s32.totalorder %s22, 1
      %p80 = por %p78, %p79
      %p81 = scmp.ne.s32.totalorder %s70, %s71
      %p82 = scmp.eq.s32.totalorder %s22, 0
      %p83 = por %p81, %p82
      %p84 = scmp.ne.s32.totalorder %s70, %s71
      %p85 = scmp.eq.s32.totalorder %s23, 1
      %p86 = por %p84, %p85
      %p88 = scmp.ne.s32.totalorder %s71, %s87
      %p89 = scmp.eq.s32.totalorder %s23, 0
      %p90 = por %p88, %p89
      %s91 = ssub.s32 %s25, %s32
      %s92 = ssub.s32 %s24, %s36
      %s93 = sor.u32 %s91, %s92
      %p94 = scmp.eq.s32.totalorder %s93, 0
      %s96 = sadd.s32 %s95, 1
      %s97 = scalar_select %p94, %s95, %s96
      %p100 = pneg %p94
      %p101 = scmp.eq.s32.totalorder %s17, 1
      %p102 = por %p100, %p101
      %p103 = scmp.ne.s32.totalorder %s95, %s98
      %p104 = scmp.eq.s32.totalorder %s17, 0
      %p105 = por %p103, %p104
      %p106 = scmp.ne.s32.totalorder %s95, %s98
      %p107 = scmp.eq.s32.totalorder %s22, 1
      %p108 = por %p106, %p107
      %p109 = scmp.ne.s32.totalorder %s98, %s99
      %p110 = scmp.eq.s32.totalorder %s22, 0
      %p111 = por %p109, %p110
      %p112 = scmp.ne.s32.totalorder %s98, %s99
      %p113 = scmp.eq.s32.totalorder %s23, 1
      %p114 = por %p112, %p113
      %p116 = scmp.ne.s32.totalorder %s99, %s115
      %p117 = scmp.eq.s32.totalorder %s23, 0
      %p118 = por %p116, %p117
      %p119 = scmp.le.s32.totalorder 1, %s17
      %p120 = scmp.lt.s32.totalorder %s17, 3
      %p121 = pnand %p119, %p120
      %p122 = pneg %p121
      // Predicated region
      $region9: #{tpu_custom_call.1} parent=5 // pred_check
        _
      $region10: #{tpu_custom_call.1} parent=5 // pred_check_branch
        %124 = sbr.rel (%p121) target = $region12
      $region11: #{tpu_custom_call.1} parent=5 // pred_region
        %s125 = ssub.s32 %s17, 1
      $region12: #{tpu_custom_call.1} parent=5 // pred_fallthru
        _
      %p126 = scmp.lt.s32.totalorder %s17, 2
      // Predicated region
      $region13: #{tpu_custom_call.1} parent=5 // pred_check
        %p127 = pneg %p126
      $region14: #{tpu_custom_call.1} parent=5 // pred_check_branch
        %129 = sbr.rel (%p127) target = $region16
      $region15: #{tpu_custom_call.1} parent=5 // pred_region
        // Predicated region
        $region17: #{tpu_custom_call.1} parent=15 // pred_check
          %p130 = pneg %p51
        $region18: #{tpu_custom_call.1} parent=15 // pred_check_branch
          %132 = sbr.rel (%p130) target = $region20
        $region19: #{tpu_custom_call.1} parent=15 // pred_region
          %s133 = sand.u32 %s41, 1
          %s134 = scalar_lea.sflag [#allocation3], %s133
          %s135 = sand.u32 %s41, 1
          %s136 = smul.addr %s135, 16
          %s137 = scalar_lea.vmem [#allocation2], %s136
          %s138 = smul.u32 2, %s25
          %s140 = ssub.s32 256, 256
          %141 = vsyncadd %s134, %s140
          %s142 = smul.addr %s138, 2
          %s143 = sadd.s32 %s24, %s142
          %s144 = smul.addr %s143, 128
          %s145 = scalar_lea.hbm %s0, %s144
          %s146 = sshll.u32 %s137, 4
          %s147 = int_to_ptr.vmem [resolvable:$true] %s146
          %152 = dma.hbm_to_vmem [thread:$0]  %s145, 256, %s147, %s134, 256, 128, 8
        $region20: #{tpu_custom_call.1} parent=15 // pred_fallthru
          _
        // Predicated region
        $region21: #{tpu_custom_call.1} parent=15 // pred_check
          %p153 = pneg %p77
        $region22: #{tpu_custom_call.1} parent=15 // pred_check_branch
          %155 = sbr.rel (%p153) target = $region24
        $region23: #{tpu_custom_call.1} parent=15 // pred_region
          %s156 = sand.u32 %s67, 1
          %s157 = scalar_lea.sflag [#allocation6], %s156
          %s158 = sand.u32 %s67, 1
          %s159 = smul.addr %s158, 8
          %s160 = scalar_lea.vmem [#allocation5], %s159
          %s162 = ssub.s32 128, 128
          %163 = vsyncadd %s157, %s162
          %s164 = smul.addr %s24, 128
          %s165 = scalar_lea.hbm %s1, %s164
          %s167 = sshll.u32 %s160, 4
          %s168 = int_to_ptr.vmem [resolvable:$true] %s167
          %170 = dma.hbm_to_vmem [thread:$0]  %s165, 128, %s168, %s157
        $region24: #{tpu_custom_call.1} parent=15 // pred_fallthru
          _
      $region16: #{tpu_custom_call.1} parent=5 // pred_fallthru
        _
      %p171 = scmp.le.s32.totalorder 1, %s17
      %p172 = scmp.lt.s32.totalorder %s17, 3
      %p173 = pnand %p171, %p172
      %p174 = pneg %p173
      // Predicated region
      $region25: #{tpu_custom_call.1} parent=5 // pred_check
        _
      $region26: #{tpu_custom_call.1} parent=5 // pred_check_branch
        %176 = sbr.rel (%p173) target = $region28
      $region27: #{tpu_custom_call.1} parent=5 // pred_region
        %s177 = ssub.s32 %s17, 1
        %s178 = sand.u32 %s44, 1
        %s179 = scalar_lea.sflag [#allocation3], %s178
        %s180 = sand.u32 %s44, 1
        %s181 = smul.addr %s180, 16
        %s182 = scalar_lea.vmem [#allocation2], %s181
        // Predicated region
        $region29: #{tpu_custom_call.1} parent=27 // pred_check
          %p183 = pneg %p57
        $region30: #{tpu_custom_call.1} parent=27 // pred_check_branch
          %185 = sbr.rel (%p183) target = $region32
        $region31: #{tpu_custom_call.1} parent=27 // pred_region
          %186 = dma.done %s179, 256
        $region32: #{tpu_custom_call.1} parent=27 // pred_fallthru
          _
        %s187 = sand.u32 %s70, 1
        %s188 = scalar_lea.sflag [#allocation6], %s187
        %s189 = sand.u32 %s70, 1
        %s190 = smul.addr %s189, 8
        %s191 = scalar_lea.vmem [#allocation5], %s190
        // Predicated region
        $region33: #{tpu_custom_call.1} parent=27 // pred_check
          %p192 = pneg %p83
        $region34: #{tpu_custom_call.1} parent=27 // pred_check_branch
          %194 = sbr.rel (%p192) target = $region36
        $region35: #{tpu_custom_call.1} parent=27 // pred_region
          %195 = dma.done %s188, 128
        $region36: #{tpu_custom_call.1} parent=27 // pred_fallthru
          _
        %s196 = sand.u32 %s44, 1
        %s197 = scalar_lea.sflag [#allocation3], %s196
        %s198 = sand.u32 %s44, 1
        %s199 = smul.addr %s198, 16
        %s200 = scalar_lea.vmem [#allocation2], %s199
        %p201 = pneg %p57
        %p202 = pneg %p54
        %s203 = sand.u32 %s70, 1
        %s204 = scalar_lea.sflag [#allocation6], %s203
        %s205 = sand.u32 %s70, 1
        %s206 = smul.addr %s205, 8
        %s207 = scalar_lea.vmem [#allocation5], %s206
        %p208 = pneg %p83
        %p209 = pneg %p80
        %p210 = pneg %p111
        %p211 = pneg %p108
        %s212 = sand.u32 %s98, 1
        %s213 = scalar_lea.sflag [#allocation4], %s212
        %s214 = sand.u32 %s98, 1
        %s215 = smul.addr %s214, 16
        %s216 = scalar_lea.vmem [#allocation7], %s215
        %s217 = smul.u32 2, %s27
        %s218 = smul.u32 2, %s27
        %v219 = vld [vmem:[%s182] sm:$0xff]
        %v220 = vld [vmem:[%s182 + $0x8] sm:$0xff]
        %v221 = vld [vmem:[%s191] sm:$0xff]
        %v222 = vadd.f32 %v219, %v221
        %v223 = vadd.f32 %v220, %v221
        %224 = vst [vmem:[%s216] sm:$0xff] %v222
        %225 = vst [vmem:[%s216 + $0x8] sm:$0xff] %v223
        %s226 = sand.u32 %s98, 1
        %s227 = scalar_lea.sflag [#allocation4], %s226
        %s228 = sand.u32 %s98, 1
        %s229 = smul.addr %s228, 16
        %s230 = scalar_lea.vmem [#allocation7], %s229
        // Predicated region
        $region37: #{tpu_custom_call.1} parent=27 // pred_check
          %p231 = pneg %p108
        $region38: #{tpu_custom_call.1} parent=27 // pred_check_branch
          %233 = sbr.rel (%p231) target = $region40
        $region39: #{tpu_custom_call.1} parent=27 // pred_region
          %s234 = smul.u32 2, %s27
          %s236 = ssub.s32 256, 256
          %237 = vsyncadd %s227, %s236
          %s238 = smul.addr %s234, 2
          %s239 = sadd.s32 %s26, %s238
          %s240 = smul.addr %s239, 128
          %s241 = scalar_lea.hbm %s2, %s240
          %s242 = sshll.u32 %s230, 4
          %s243 = int_to_ptr.vmem [resolvable:$true] %s242
          %248 = dma.vmem_to_hbm [thread:$0]  %s243, 256, %s241, %s227, 128, 256, 8
        $region40: #{tpu_custom_call.1} parent=27 // pred_fallthru
          _
      $region28: #{tpu_custom_call.1} parent=5 // pred_fallthru
        _
      %p249 = scmp.le.s32.totalorder 2, %s17
      // Predicated region
      $region41: #{tpu_custom_call.1} parent=5 // pred_check
        %p250 = pneg %p249
      $region42: #{tpu_custom_call.1} parent=5 // pred_check_branch
        %252 = sbr.rel (%p250) target = $region44
      $region43: #{tpu_custom_call.1} parent=5 // pred_region
        %s253 = ssub.s32 %s17, 2
        // Predicated region
        $region45: #{tpu_custom_call.1} parent=43 // pred_check
          %p254 = pneg %p114
        $region46: #{tpu_custom_call.1} parent=43 // pred_check_branch
          %256 = sbr.rel (%p254) target = $region48
        $region47: #{tpu_custom_call.1} parent=43 // pred_region
          %s257 = sand.u32 %s99, 1
          %s258 = scalar_lea.sflag [#allocation4], %s257
          %s259 = sand.u32 %s99, 1
          %s260 = smul.addr %s259, 16
          %s261 = scalar_lea.vmem [#allocation7], %s260
          %262 = dma.done %s258, 256
        $region48: #{tpu_custom_call.1} parent=43 // pred_fallthru
          _
      $region44: #{tpu_custom_call.1} parent=5 // pred_fallthru
        _
    $region6: #{tpu_custom_call.1} parent=1 // loop_footer
      %s21 = sadd.s32 1, %s17
    $region7: #{tpu_custom_call.1} parent=1 // loop_footer_branch
      %16 = sbr.rel target = $region3
    $region8: #{tpu_custom_call.1} parent=1 // loop_exit
      _
    %263 = vsyncpa [#allocation3], 1
    %s264 = scalar_lea.sflag [#allocation3], 1
    %265 = vsyncpa %s264, 1
    %266 = vsyncpa [#allocation6], 1
    %s267 = scalar_lea.sflag [#allocation6], 1
    %268 = vsyncpa %s267, 1
    %269 = vsyncpa [#allocation4], 1
    %s270 = scalar_lea.sflag [#allocation4], 1
    %271 = vsyncpa %s270, 1

</llo_original>
